<compile_context>
chip_gen: v5e
topology: v5e:2x2
jax: 0.10.0
libtpu: 0.0.40
codegen_flags: <defaults>
</compile_context>

<pallas_src>
import functools

import jax
import jax.numpy as jnp
from jax import lax
from jax.experimental import pallas as pl
from jax.experimental.pallas import tpu as pltpu


_NEG_SLOPE = 0.01  # nn.LeakyReLU() default negative_slope


def autopad(k, p=None, d=1):
    if d > 1:
        k = d * (k - 1) + 1 if isinstance(k, int) else [d * (x - 1) + 1 for x in k]
    if p is None:
        p = k // 2 if isinstance(k, int) else [x // 2 for x in k]
    return p


def _round_up(n, m):
    return ((n + m - 1) // m) * m


def _pick_tile(n, candidates):
    for c in candidates:
        if n % c == 0:
            return c
    return n  # full extent is always a legal block dim


def _convl_kernel(x_ref, w_ref, scale_ref, bias_ref, o_ref, acc_ref, *, tci, n_red):
    # x_ref:     (1, tci, tn)   -- batch, K-tile, lane-dense spatial tile
    # w_ref:     (tco, K_pad)   -- resident weight slab for this out-channel tile
    # scale/bias_ref: (tco, 1)  -- folded BatchNorm per-output-channel affine (f32)
    # o_ref:     (1, tco, tn)   -- disjoint, lane-dense output tile
    # acc_ref:   (tco, tn) f32 scratch, resident across the reduction axis only
    r = pl.program_id(3)

    @pl.when(r == 0)
    def _():
        acc_ref[...] = jnp.zeros_like(acc_ref)

    if n_red == 1:
        w_blk = w_ref[...]                               # whole slab, no slicing
    else:
        k0 = pl.multiple_of(r * tci, tci)                # tci is a multiple of 128 here
        w_blk = w_ref[:, pl.ds(k0, tci)]

    acc_ref[...] += jnp.dot(w_blk, x_ref[0], preferred_element_type=jnp.float32)

    @pl.when(r == pl.num_programs(3) - 1)
    def _():
        y = acc_ref[...] * scale_ref[...] + bias_ref[...]   # fused BatchNorm (f32)
        y = jnp.where(y >= 0, y, _NEG_SLOPE * y)            # fused LeakyReLU
        o_ref[0] = y.astype(o_ref.dtype)


def convl_forward(x, weight, bn_gamma, bn_beta, bn_mean, bn_var,
                  *, stride=1, padding=None, dilation=1, groups=1, eps=1e-5,
                  compute_dtype=None):
    """Fused Conv2d(bias=False) -> BatchNorm2d (inference) -> LeakyReLU. NCHW."""
    assert groups == 1  # TODO(synk): grouped conv (g > 1) not implemented in the Pallas path.
    # TODO(synk): training-mode BatchNorm (batch statistics) not implemented; running stats used.
    B, C1, H, W = x.shape
    C2, C1w, kh, kw = weight.shape
    assert C1w == C1 and kh == kw, "square kernels, groups=1 only"
    k, s, d = kh, stride, dilation
    p = autopad(k, padding, d)

    H_out = (H + 2 * p - d * (k - 1) - 1) // s + 1
    W_out = (W + 2 * p - d * (k - 1) - 1) // s + 1
    HW = H_out * W_out
    T = k * k
    K = T * C1

    cdt = jnp.dtype(compute_dtype) if compute_dtype is not None else x.dtype
    out_dtype = x.dtype

    # ---- Fold BN into a per-output-channel scale / bias (f32). ----
    inv_std = 1.0 / jnp.sqrt(bn_var.astype(jnp.float32) + eps)
    scale = (bn_gamma.astype(jnp.float32) * inv_std).reshape(C2, 1)
    bias = (bn_beta.astype(jnp.float32)
            - bn_mean.astype(jnp.float32) * bn_gamma.astype(jnp.float32) * inv_std
            ).reshape(C2, 1)

    # ---- im2col: fold (tap, in-channel) into one contraction dim K = k*k*C1. ----
    if k == 1 and s == 1 and p == 0 and d == 1:
        x_col = x.reshape(B, C1, HW)          # pure reshape, zero extra HBM traffic
    else:
        # TODO(synk): the k>1 path still materializes the k*k-tap im2col in HBM; a
        # halo-DMA input path (memory_space=pl.ANY + make_async_copy of row tiles)
        # would remove the T-times input traffic.
        xp = jnp.pad(x, ((0, 0), (0, 0), (p, p), (p, p)))
        taps = []
        for ih in range(k):
            for iw in range(k):
                h0, w0 = ih * d, iw * d
                taps.append(
                    lax.slice(
                        xp,
                        (0, 0, h0, w0),
                        (B, C1, h0 + (H_out - 1) * s + 1, w0 + (W_out - 1) * s + 1),
                        (1, 1, s, s),
                    )
                )
        x_col = jnp.stack(taps, axis=1).reshape(B, K, HW)     # K index = tap*C1 + ci

    # Matching weight layout: (C2, kh, kw, C1) -> (C2, K) with K index = tap*C1 + ci.
    w_col = jnp.transpose(weight, (0, 2, 3, 1)).reshape(C2, K)

    # ---- Pad the contraction dim (sublane dim of x, lane dim of the w slab). ----
    K8 = _round_up(K, 8)
    if K8 <= 1024:
        K_pad, tci = K8, K8          # single reduction step, whole-K matmul
    else:
        tci = 512                    # multiple of 128 -> clean lane slicing of the slab
        K_pad = _round_up(K, tci)
    n_red = K_pad // tci

    # ---- Pad HW to a lane-dense multiple of 128; prefer larger tiles when cheap. ----
    HW_pad = _round_up(HW, 128)
    tn = _pick_tile(HW_pad, (2048, 1024, 512, 256, 128))
    if tn < 512 and HW >= 512:
        hw512 = _round_up(HW, 512)
        if hw512 - HW <= max(HW // 4, 128):   # accept modest padding for a 4x tile
            HW_pad, tn = hw512, 512
    n_hw = HW_pad // tn

    tco = _pick_tile(C2, (256, 128))
    n_co = C2 // tco

    if K_pad != K or HW_pad != HW:
        x_col = jnp.pad(x_col, ((0, 0), (0, K_pad - K), (0, HW_pad - HW)))
    if K_pad != K:
        w_col = jnp.pad(w_col, ((0, 0), (0, K_pad - K)))

    x_col = x_col.astype(cdt)
    w_col = w_col.astype(cdt)

    # ---- VMEM budget: 2x x-tile + 2x resident w slab + 2x out tile + f32 acc. ----
    isz = jnp.dtype(cdt).itemsize
    osz = jnp.dtype(out_dtype).itemsize
    vmem_need = (2 * tci * tn * isz + 2 * tco * K_pad * isz
                 + 2 * tco * tn * osz + tco * tn * 4 + 4 * tco * 4)
    vmem_limit = int(min(max(vmem_need + (8 << 20), 32 << 20), 56 << 20))

    # Honest per-call traffic / work (input read once, weights once per co-tile).
    flops = 2 * B * C2 * K_pad * HW_pad
    bytes_accessed = int(B * K_pad * HW_pad * isz + C2 * K_pad * isz
                         + B * C2 * HW_pad * osz + 2 * C2 * 4)

    kernel = functools.partial(_convl_kernel, tci=tci, n_red=n_red)

    out = pl.pallas_call(
        kernel,
        out_shape=jax.ShapeDtypeStruct((B, C2, HW_pad), out_dtype),
        grid_spec=pltpu.PrefetchScalarGridSpec(
            num_scalar_prefetch=0,
            grid=(B, n_co, n_hw, n_red),
            in_specs=[
                # x tile: changes every step.
                pl.BlockSpec((1, tci, tn), lambda b, co, hw, r: (b, r, hw)),
                # weight slab: resident per out-channel tile (no re-DMA across hw/r).
                pl.BlockSpec((tco, K_pad), lambda b, co, hw, r: (co, 0)),
                pl.BlockSpec((tco, 1), lambda b, co, hw, r: (co, 0)),
                pl.BlockSpec((tco, 1), lambda b, co, hw, r: (co, 0)),
            ],
            out_specs=pl.BlockSpec((1, tco, tn), lambda b, co, hw, r: (b, co, hw)),
            scratch_shapes=[pltpu.VMEM((tco, tn), jnp.float32)],
        ),
        compiler_params=pltpu.CompilerParams(
            dimension_semantics=("parallel", "parallel", "parallel", "arbitrary"),
            vmem_limit_bytes=vmem_limit,
        ),
        cost_estimate=pl.CostEstimate(
            flops=flops, transcendentals=0, bytes_accessed=bytes_accessed),
    )(x_col, w_col, scale, bias)

    out = out[:, :, :HW]
    return out.reshape(B, C2, H_out, W_out)


def convl_reference(x, weight, gamma, beta, mean, var,
                    *, stride=1, padding=None, dilation=1, groups=1, eps=1e-5):
    """Pure-JAX transliteration of ConvL.forward (ground truth)."""
    k = weight.shape[2]
    p = autopad(k, padding, dilation)
    y = lax.conv_general_dilated(
        x, weight, window_strides=(stride, stride), padding=((p, p), (p, p)),
        rhs_dilation=(dilation, dilation),
        dimension_numbers=("NCHW", "OIHW", "NCHW"),
        feature_group_count=groups)
    scale = gamma / jnp.sqrt(var + eps)
    y = y * scale[None, :, None, None] + (beta - mean * scale)[None, :, None, None]
    return jnp.where(y >= 0, y, _NEG_SLOPE * y)


if __name__ == "__main__":
    key = jax.random.PRNGKey(0)
    kx, kw1, kw3, kg, kb, km, kv = jax.random.split(key, 7)

    B, C1, C2, SP = 2, 4, 8, 16
    x = jax.random.normal(kx, (B, C1, SP, SP), dtype=jnp.float32)

    gamma = jax.random.uniform(kg, (C2,), jnp.float32, 0.5, 1.5)
    beta = jax.random.normal(kb, (C2,), jnp.float32) * 0.1
    mean = jax.random.normal(km, (C2,), jnp.float32) * 0.1
    var = jax.random.uniform(kv, (C2,), jnp.float32, 0.5, 1.5)

    # Case 1: ConvL defaults (k=1, s=1) -- pure-reshape input path.
    w1 = jax.random.normal(kw1, (C2, C1, 1, 1), jnp.float32) * 0.1
    out1 = jax.block_until_ready(convl_forward(x, w1, gamma, beta, mean, var))
    ref1 = convl_reference(x, w1, gamma, beta, mean, var)
    assert out1.shape == ref1.shape == (B, C2, SP, SP), out1.shape
    assert bool(jnp.allclose(out1, ref1, atol=2e-2, rtol=2e-2)), "k=1 mismatch"

    # Case 2: k=3, stride=2 (typical yolov5 downsampling ConvL), f32 compute.
    w3 = jax.random.normal(kw3, (C2, C1, 3, 3), jnp.float32) * 0.1
    out3 = jax.block_until_ready(
        convl_forward(x, w3, gamma, beta, mean, var, stride=2))
    ref3 = convl_reference(x, w3, gamma, beta, mean, var, stride=2)
    assert out3.shape == ref3.shape == (B, C2, SP // 2, SP // 2), out3.shape
    assert bool(jnp.allclose(out3, ref3, atol=2e-2, rtol=2e-2)), "k=3 s=2 mismatch"

    # Case 3: same conv, bf16 MXU feed with f32 accumulation / epilogue.
    out3b = jax.block_until_ready(
        convl_forward(x, w3, gamma, beta, mean, var, stride=2,
                      compute_dtype=jnp.bfloat16))
    assert out3b.shape == ref3.shape
    assert bool(jnp.allclose(out3b, ref3, atol=5e-2, rtol=5e-2)), "bf16 mismatch"

    print("KERNEL_OK")
</pallas_src>

<mosaic_0001>
module attributes {stable_mosaic.version = 11 : i64} {
  func.func @_convl_kernel(%arg0: i32, %arg1: i32, %arg2: i32, %arg3: i32, %arg4: memref<1x8x256xf32, #tpu.memory_space<vmem>>, %arg5: memref<8x8xf32, #tpu.memory_space<vmem>>, %arg6: memref<8x1xf32, #tpu.memory_space<vmem>>, %arg7: memref<8x1xf32, #tpu.memory_space<vmem>>, %arg8: memref<1x8x256xf32, #tpu.memory_space<vmem>>, %arg9: memref<8x256xf32, #tpu.memory_space<vmem>>) attributes {dimension_semantics = [#tpu.dimension_semantics<parallel>, #tpu.dimension_semantics<parallel>, #tpu.dimension_semantics<parallel>, #tpu.dimension_semantics<arbitrary>], iteration_bounds = array<i64: 2, 1, 1, 1>, scalar_prefetch = 0 : i64, scratch_operands = 1 : i64, tpu.core_type = #tpu.core_type<tc>, window_params = [{transform_indices = @transform_0, window_bounds = array<i64: 1, 8, 256>}, {transform_indices = @transform_1, window_bounds = array<i64: 8, 8>}, {transform_indices = @transform_2, window_bounds = array<i64: 8, 1>}, {transform_indices = @transform_3, window_bounds = array<i64: 8, 1>}, {transform_indices = @transform_4, window_bounds = array<i64: 1, 8, 256>}]} {
    %c0_i32 = arith.constant 0 : i32
    %0 = arith.cmpi eq, %arg3, %c0_i32 : i32
    %1 = arith.extui %0 : i1 to i32
    %c0_i32_0 = arith.constant 0 : i32
    %2 = arith.cmpi ne, %1, %c0_i32_0 : i32
    scf.if %2 {
      %cst_11 = arith.constant 0.000000e+00 : f32
      %13 = vector.broadcast %cst_11 : f32 to vector<8x256xf32>
      %c0_12 = arith.constant 0 : index
      %c0_13 = arith.constant 0 : index
      %14 = vector.load %arg9[%c0_12, %c0_13] : memref<8x256xf32, #tpu.memory_space<vmem>>, vector<8x256xf32>
      tpu.vector_store %arg9[%c0_12, %c0_13], %13 {strides = array<i32>} : memref<8x256xf32, #tpu.memory_space<vmem>>, vector<8x256xf32>,
    } else {
    }
    %c0 = arith.constant 0 : index
    %c0_1 = arith.constant 0 : index
    %3 = vector.load %arg5[%c0, %c0_1] : memref<8x8xf32, #tpu.memory_space<vmem>>, vector<8x8xf32>
    %c0_2 = arith.constant 0 : index
    %c0_3 = arith.constant 0 : index
    %4 = vector.load %arg9[%c0_2, %c0_3] : memref<8x256xf32, #tpu.memory_space<vmem>>, vector<8x256xf32>
    %c0_4 = arith.constant 0 : index
    %c0_5 = arith.constant 0 : index
    %c0_6 = arith.constant 0 : index
    %5 = vector.load %arg4[%c0_4, %c0_5, %c0_6] : memref<1x8x256xf32, #tpu.memory_space<vmem>>, vector<1x8x256xf32>
    %6 = vector.shape_cast %5 : vector<1x8x256xf32> to vector<8x256xf32>
    %cst = arith.constant dense<0.000000e+00> : vector<8x256xf32>
    %7 = tpu.matmul %3, %6, %cst {dimension_numbers = #tpu.dot_dimension_numbers<[1], [0], [0], [1], [0, 0, 1, 1], [], []>} : vector<8x8xf32>, vector<8x256xf32>, vector<8x256xf32> -> vector<8x256xf32>
    %8 = arith.addf %4, %7 : vector<8x256xf32>
    %c0_7 = arith.constant 0 : index
    %c0_8 = arith.constant 0 : index
    %9 = vector.load %arg9[%c0_7, %c0_8] : memref<8x256xf32, #tpu.memory_space<vmem>>, vector<8x256xf32>
    tpu.vector_store %arg9[%c0_7, %c0_8], %8 {strides = array<i32>} : memref<8x256xf32, #tpu.memory_space<vmem>>, vector<8x256xf32>,
    %c0_i32_9 = arith.constant 0 : i32
    %10 = arith.cmpi eq, %arg3, %c0_i32_9 : i32
    %11 = arith.extui %10 : i1 to i32
    %c0_i32_10 = arith.constant 0 : i32
    %12 = arith.cmpi ne, %11, %c0_i32_10 : i32
    scf.if %12 {
      %c0_11 = arith.constant 0 : index
      %c0_12 = arith.constant 0 : index
      %13 = vector.load %arg9[%c0_11, %c0_12] : memref<8x256xf32, #tpu.memory_space<vmem>>, vector<8x256xf32>
      %c0_13 = arith.constant 0 : index
      %c0_14 = arith.constant 0 : index
      %14 = vector.load %arg6[%c0_13, %c0_14] : memref<8x1xf32, #tpu.memory_space<vmem>>, vector<8x1xf32>
      %15 = vector.broadcast %14 : vector<8x1xf32> to vector<8x256xf32>
      %16 = arith.mulf %13, %15 : vector<8x256xf32>
      %c0_15 = arith.constant 0 : index
      %c0_16 = arith.constant 0 : index
      %17 = vector.load %arg7[%c0_15, %c0_16] : memref<8x1xf32, #tpu.memory_space<vmem>>, vector<8x1xf32>
      %18 = vector.broadcast %17 : vector<8x1xf32> to vector<8x256xf32>
      %19 = arith.addf %16, %18 : vector<8x256xf32>
      %cst_17 = arith.constant 0.000000e+00 : f32
      %20 = vector.broadcast %cst_17 : f32 to vector<8x256xf32>
      %21 = arith.cmpf oge, %19, %20 : vector<8x256xf32>
      %cst_18 = arith.constant 0.00999999977 : f32
      %22 = vector.broadcast %cst_18 : f32 to vector<8x256xf32>
      %23 = arith.mulf %22, %19 : vector<8x256xf32>
      %24 = arith.select %21, %19, %23 : vector<8x256xi1>, vector<8x256xf32>
      %c0_19 = arith.constant 0 : index
      %c0_20 = arith.constant 0 : index
      %c0_21 = arith.constant 0 : index
      %25 = vector.load %arg8[%c0_19, %c0_20, %c0_21] : memref<1x8x256xf32, #tpu.memory_space<vmem>>, vector<1x8x256xf32>
      %26 = vector.shape_cast %25 : vector<1x8x256xf32> to vector<8x256xf32>
      %27 = vector.shape_cast %24 : vector<8x256xf32> to vector<1x8x256xf32>
      tpu.vector_store %arg8[%c0_19, %c0_20, %c0_21], %27 {strides = array<i32>} : memref<1x8x256xf32, #tpu.memory_space<vmem>>, vector<1x8x256xf32>,
    } else {
    }
    return
  }
  func.func @transform_0(%arg0: i32, %arg1: i32, %arg2: i32, %arg3: i32) -> (i32, i32, i32) {
    %c0_i32 = arith.constant 0 : i32
    return %arg0, %arg3, %arg2 : i32, i32, i32
  }
  func.func @transform_1(%arg0: i32, %arg1: i32, %arg2: i32, %arg3: i32) -> (i32, i32) {
    %c0_i32 = arith.constant 0 : i32
    %c0_i32_0 = arith.constant 0 : i32
    return %arg1, %c0_i32 : i32, i32
  }
  func.func @transform_2(%arg0: i32, %arg1: i32, %arg2: i32, %arg3: i32) -> (i32, i32) {
    %c0_i32 = arith.constant 0 : i32
    %c0_i32_0 = arith.constant 0 : i32
    return %arg1, %c0_i32 : i32, i32
  }
  func.func @transform_3(%arg0: i32, %arg1: i32, %arg2: i32, %arg3: i32) -> (i32, i32) {
    %c0_i32 = arith.constant 0 : i32
    %c0_i32_0 = arith.constant 0 : i32
    return %arg1, %c0_i32 : i32, i32
  }
  func.func @transform_4(%arg0: i32, %arg1: i32, %arg2: i32, %arg3: i32) -> (i32, i32, i32) {
    %c0_i32 = arith.constant 0 : i32
    return %arg0, %arg1, %arg2 : i32, i32, i32
  }
}

</mosaic_0001>

<llo_original>
// kernel: tpu_custom_call.1
$region0: #{tpu_custom_call.1}
  #allocation0 [shape = 'u32[]', space=smem, size = 0x4, offset = 0x4, fixed_abs, tag = 'smem constant byte address 0x4 - core index']
  #allocation1 [shape = 'u32[72,128]{1,0:T(1,128)}', space=vmem, size = 0x9000, scoped, tag = 'internal scratch']
  #allocation2 [shape = 'f32[8,256]{1,0:T(8,128)}', space=vmem, size = 0x2000, scoped, tag = 'scratch operand']
  %s0 = inlined_call_operand.hbm [shape: f32[2,8,256], index: 0, kind: input, shape index: {}]
  %s1 = inlined_call_operand.vmem [shape: f32[8,8], index: 1, kind: input, shape index: {}]
  %s2 = inlined_call_operand.vmem [shape: f32[8,1], index: 2, kind: input, shape index: {}]
  %s3 = inlined_call_operand.vmem [shape: f32[8,1], index: 3, kind: input, shape index: {}]
  %s4 = inlined_call_operand.hbm [shape: f32[2,8,256], index: 4, kind: output, shape index: {}]
  %s5 = sld [smem:[#allocation0]]
  $region61: #{tpu_custom_call.1} parent=0
    _
  %s7 = ssub.s32 1, %s5
  %s8 = scalar_select 0, %s7, %s5
  $region1: #{tpu_custom_call.1} parent=0
    #allocation3 [shape = 'u8[16384]{0}', space=vmem, size = 0x4000, scoped, tag = 'input window, operand 0']
    #allocation4 [shape = 's32[2]{0}', space=sflag, size = 0x8, scoped, tag = 'scoped memory for tpu_custom_call.1']
    #allocation5 [shape = 's32[2]{0}', space=sflag, size = 0x8, scoped, tag = 'scoped memory for tpu_custom_call.1']
    #allocation6 [shape = 'u8[16384]{0}', space=vmem, size = 0x4000, scoped, tag = 'output window, operand 0']
    %9 = vsyncpa [#allocation4], 0
    %s10 = scalar_lea.sflag [#allocation4], 1
    %11 = vsyncpa %s10, 0
    %12 = vsyncpa [#allocation5], 0
    %s13 = scalar_lea.sflag [#allocation5], 1
    %14 = vsyncpa %s13, 0
    loop: start=0, step=1, limit=4
    $region2: #{tpu_custom_call.1} parent=1 // loop_pre_header
      _
    $region3: #{tpu_custom_call.1} parent=1 // loop_header
      %s16 = sphi 0, %s20
      %p17 = scmp.ge.s32.totalorder %s16, 4
      %s23 = sphi 0, %s49
      %s24 = sphi 0, %s45
      %s25 = sphi 0, %s41
      %s26 = sphi 0, %s37
      %s27 = sphi 0, %s23
      %s28 = sphi 0, %s24
      %s29 = sphi 0, %s25
      %s30 = sphi 0, %s26
      %s31 = sphi 0, %s27
      %s32 = sphi 0, %s28
      %s33 = sphi 0, %s29
      %s34 = sphi 0, %s30
      %s56 = sphi 0, %s58
      %s59 = sphi 0, %s56
      %s60 = sphi 0, %s59
      %s76 = sphi 0, %s60
      %s82 = sphi 0, %s84
      %s85 = sphi 0, %s82
      %s86 = sphi 0, %s85
      %s102 = sphi 0, %s86
      %s108 = sphi 0, %s110
      %s111 = sphi 0, %s108
      %s112 = sphi 0, %s111
      %s128 = sphi 0, %s112
      %s134 = sphi 0, %s136
      %s137 = sphi 0, %s134
      %s138 = sphi 0, %s137
      %s154 = sphi 0, %s138
      %s164 = sphi 0, %s166
      %s167 = sphi 0, %s164
      %s168 = sphi 0, %s167
      %s184 = sphi 0, %s168
    $region4: #{tpu_custom_call.1} parent=1 // loop_header_branch
      %19 = sbr.rel (%p17) target = $region8
    $region5: #{tpu_custom_call.1} parent=1 // loop_body
      %s21 = ssub.s32 %s16, 1
      %s22 = ssub.s32 %s16, 2
      %s35 = sadd.s32 1, %s26
      %p36 = scmp.ge.s32.totalorder %s35, 1
      %s37 = scalar_select %p36, 0, %s35
      %s38 = sadd.s32 1, %s25
      %s39 = scalar_select %p36, %s38, %s25
      %p40 = scmp.ge.s32.totalorder %s39, 1
      %s41 = scalar_select %p40, 0, %s39
      %s42 = sadd.s32 1, %s24
      %s43 = scalar_select %p40, %s42, %s24
      %p44 = scmp.ge.s32.totalorder %s43, 1
      %s45 = scalar_select %p44, 0, %s43
      %s46 = sadd.s32 1, %s23
      %s47 = scalar_select %p44, %s46, %s23
      %p48 = scmp.ge.s32.totalorder %s47, 2
      %s49 = scalar_select %p48, 0, %s47
      %s50 = ssub.s32 %s23, %s49
      %s51 = ssub.s32 %s26, %s37
      %s52 = sor.u32 %s50, %s51
      %s53 = ssub.s32 %s25, %s41
      %s54 = sor.u32 %s52, %s53
      %p55 = scmp.eq.s32.totalorder %s54, 0
      %s57 = sadd.s32 %s56, 1
      %s58 = scalar_select %p55, %s56, %s57
      %p61 = pneg %p55
      %p62 = scmp.eq.s32.totalorder %s16, 1
      %p63 = por %p61, %p62
      %p64 = scmp.ne.s32.totalorder %s56, %s59
      %p65 = scmp.eq.s32.totalorder %s16, 0
      %p66 = por %p64, %p65
      %p67 = scmp.ne.s32.totalorder %s56, %s59
      %p68 = scmp.eq.s32.totalorder %s21, 1
      %p69 = por %p67, %p68
      %p70 = scmp.ne.s32.totalorder %s59, %s60
      %p71 = scmp.eq.s32.totalorder %s21, 0
      %p72 = por %p70, %p71
      %p73 = scmp.ne.s32.totalorder %s59, %s60
      %p74 = scmp.eq.s32.totalorder %s22, 1
      %p75 = por %p73, %p74
      %p77 = scmp.ne.s32.totalorder %s60, %s76
      %p78 = scmp.eq.s32.totalorder %s22, 0
      %p79 = por %p77, %p78
      %s80 = ssub.s32 %s24, %s45
      %p81 = scmp.eq.s32.totalorder %s80, 0
      %s83 = sadd.s32 %s82, 1
      %s84 = scalar_select %p81, %s82, %s83
      %p87 = pneg %p81
      %p88 = scmp.eq.s32.totalorder %s16, 1
      %p89 = por %p87, %p88
      %p90 = scmp.ne.s32.totalorder %s82, %s85
      %p91 = scmp.eq.s32.totalorder %s16, 0
      %p92 = por %p90, %p91
      %p93 = scmp.ne.s32.totalorder %s82, %s85
      %p94 = scmp.eq.s32.totalorder %s21, 1
      %p95 = por %p93, %p94
      %p96 = scmp.ne.s32.totalorder %s85, %s86
      %p97 = scmp.eq.s32.totalorder %s21, 0
      %p98 = por %p96, %p97
      %p99 = scmp.ne.s32.totalorder %s85, %s86
      %p100 = scmp.eq.s32.totalorder %s22, 1
      %p101 = por %p99, %p100
      %p103 = scmp.ne.s32.totalorder %s86, %s102
      %p104 = scmp.eq.s32.totalorder %s22, 0
      %p105 = por %p103, %p104
      %s106 = ssub.s32 %s24, %s45
      %p107 = scmp.eq.s32.totalorder %s106, 0
      %s109 = sadd.s32 %s108, 1
      %s110 = scalar_select %p107, %s108, %s109
      %p113 = pneg %p107
      %p114 = scmp.eq.s32.totalorder %s16, 1
      %p115 = por %p113, %p114
      %p116 = scmp.ne.s32.totalorder %s108, %s111
      %p117 = scmp.eq.s32.totalorder %s16, 0
      %p118 = por %p116, %p117
      %p119 = scmp.ne.s32.totalorder %s108, %s111
      %p120 = scmp.eq.s32.totalorder %s21, 1
      %p121 = por %p119, %p120
      %p122 = scmp.ne.s32.totalorder %s111, %s112
      %p123 = scmp.eq.s32.totalorder %s21, 0
      %p124 = por %p122, %p123
      %p125 = scmp.ne.s32.totalorder %s111, %s112
      %p126 = scmp.eq.s32.totalorder %s22, 1
      %p127 = por %p125, %p126
      %p129 = scmp.ne.s32.totalorder %s112, %s128
      %p130 = scmp.eq.s32.totalorder %s22, 0
      %p131 = por %p129, %p130
      %s132 = ssub.s32 %s24, %s45
      %p133 = scmp.eq.s32.totalorder %s132, 0
      %s135 = sadd.s32 %s134, 1
      %s136 = scalar_select %p133, %s134, %s135
      %p139 = pneg %p133
      %p140 = scmp.eq.s32.totalorder %s16, 1
      %p141 = por %p139, %p140
      %p142 = scmp.ne.s32.totalorder %s134, %s137
      %p143 = scmp.eq.s32.totalorder %s16, 0
      %p144 = por %p142, %p143
      %p145 = scmp.ne.s32.totalorder %s134, %s137
      %p146 = scmp.eq.s32.totalorder %s21, 1
      %p147 = por %p145, %p146
      %p148 = scmp.ne.s32.totalorder %s137, %s138
      %p149 = scmp.eq.s32.totalorder %s21, 0
      %p150 = por %p148, %p149
      %p151 = scmp.ne.s32.totalorder %s137, %s138
      %p152 = scmp.eq.s32.totalorder %s22, 1
      %p153 = por %p151, %p152
      %p155 = scmp.ne.s32.totalorder %s138, %s154
      %p156 = scmp.eq.s32.totalorder %s22, 0
      %p157 = por %p155, %p156
      %s158 = ssub.s32 %s23, %s49
      %s159 = ssub.s32 %s24, %s45
      %s160 = sor.u32 %s158, %s159
      %s161 = ssub.s32 %s25, %s41
      %s162 = sor.u32 %s160, %s161
      %p163 = scmp.eq.s32.totalorder %s162, 0
      %s165 = sadd.s32 %s164, 1
      %s166 = scalar_select %p163, %s164, %s165
      %p169 = pneg %p163
      %p170 = scmp.eq.s32.totalorder %s16, 1
      %p171 = por %p169, %p170
      %p172 = scmp.ne.s32.totalorder %s164, %s167
      %p173 = scmp.eq.s32.totalorder %s16, 0
      %p174 = por %p172, %p173
      %p175 = scmp.ne.s32.totalorder %s164, %s167
      %p176 = scmp.eq.s32.totalorder %s21, 1
      %p177 = por %p175, %p176
      %p178 = scmp.ne.s32.totalorder %s167, %s168
      %p179 = scmp.eq.s32.totalorder %s21, 0
      %p180 = por %p178, %p179
      %p181 = scmp.ne.s32.totalorder %s167, %s168
      %p182 = scmp.eq.s32.totalorder %s22, 1
      %p183 = por %p181, %p182
      %p185 = scmp.ne.s32.totalorder %s168, %s184
      %p186 = scmp.eq.s32.totalorder %s22, 0
      %p187 = por %p185, %p186
      %p188 = scmp.le.s32.totalorder 1, %s16
      %p189 = scmp.lt.s32.totalorder %s16, 3
      %p190 = pnand %p188, %p189
      %p191 = pneg %p190
      // Predicated region
      $region9: #{tpu_custom_call.1} parent=5 // pred_check
        _
      $region10: #{tpu_custom_call.1} parent=5 // pred_check_branch
        %193 = sbr.rel (%p190) target = $region12
      $region11: #{tpu_custom_call.1} parent=5 // pred_region
        %s194 = ssub.s32 %s16, 1
        // Predicated region
        $region13: #{tpu_custom_call.1} parent=11 // pred_check
          %p195 = pneg %p98
        $region14: #{tpu_custom_call.1} parent=11 // pred_check_branch
          %197 = sbr.rel (%p195) target = $region16
        $region15: #{tpu_custom_call.1} parent=11 // pred_region
          %p198 = scmp.lt.s32.totalorder %s28, 0
          %s199 = scalar_select %p198, %s28, 0
          %s200 = smul.addr %s199, 8
          %s201 = scalar_lea.vmem %s1, %s200
        $region16: #{tpu_custom_call.1} parent=11 // pred_fallthru
          _
        // Predicated region
        $region17: #{tpu_custom_call.1} parent=11 // pred_check
          %p202 = pneg %p124
        $region18: #{tpu_custom_call.1} parent=11 // pred_check_branch
          %204 = sbr.rel (%p202) target = $region20
        $region19: #{tpu_custom_call.1} parent=11 // pred_region
          %p205 = scmp.lt.s32.totalorder %s28, 0
          %s206 = scalar_select %p205, %s28, 0
          %s207 = smul.addr %s206, 8
          %s208 = scalar_lea.vmem %s2, %s207
        $region20: #{tpu_custom_call.1} parent=11 // pred_fallthru
          _
        // Predicated region
        $region21: #{tpu_custom_call.1} parent=11 // pred_check
          %p209 = pneg %p150
        $region22: #{tpu_custom_call.1} parent=11 // pred_check_branch
          %211 = sbr.rel (%p209) target = $region24
        $region23: #{tpu_custom_call.1} parent=11 // pred_region
          %p212 = scmp.lt.s32.totalorder %s28, 0
          %s213 = scalar_select %p212, %s28, 0
          %s214 = smul.addr %s213, 8
          %s215 = scalar_lea.vmem %s3, %s214
        $region24: #{tpu_custom_call.1} parent=11 // pred_fallthru
          _
      $region12: #{tpu_custom_call.1} parent=5 // pred_fallthru
        _
      %p216 = scmp.lt.s32.totalorder %s16, 2
      // Predicated region
      $region25: #{tpu_custom_call.1} parent=5 // pred_check
        %p217 = pneg %p216
      $region26: #{tpu_custom_call.1} parent=5 // pred_check_branch
        %219 = sbr.rel (%p217) target = $region28
      $region27: #{tpu_custom_call.1} parent=5 // pred_region
        // Predicated region
        $region29: #{tpu_custom_call.1} parent=27 // pred_check
          %p220 = pneg %p66
        $region30: #{tpu_custom_call.1} parent=27 // pred_check_branch
          %222 = sbr.rel (%p220) target = $region32
        $region31: #{tpu_custom_call.1} parent=27 // pred_region
          %s223 = sand.u32 %s56, 1
          %s224 = scalar_lea.sflag [#allocation4], %s223
          %s225 = sand.u32 %s56, 1
          %s226 = smul.addr %s225, 16
          %s227 = scalar_lea.vmem [#allocation3], %s226
          %s228 = smul.u32 2, %s25
          %230 = vsyncadd %s224, 0
          %s231 = smul.addr %s26, 2
          %s232 = sadd.s32 %s228, %s231
          %s233 = smul.addr %s23, 2
          %s234 = sadd.s32 %s232, %s233
          %s235 = smul.addr %s234, 8
          %s236 = scalar_lea.hbm %s0, %s235
          %s238 = sshll.u32 %s236, 4
          %s239 = int_to_ptr.hbm [resolvable:$true] %s238
          %s240 = sshll.u32 %s227, 4
          %s241 = int_to_ptr.vmem [resolvable:$true] %s240
          %243 = dma.hbm_to_vmem [thread:$0]  %s239, 256, %s241, %s224
        $region32: #{tpu_custom_call.1} parent=27 // pred_fallthru
          _
      $region28: #{tpu_custom_call.1} parent=5 // pred_fallthru
        _
      %p244 = scmp.le.s32.totalorder 1, %s16
      %p245 = scmp.lt.s32.totalorder %s16, 3
      %p246 = pnand %p244, %p245
      %p247 = pneg %p246
      // Predicated region
      $region33: #{tpu_custom_call.1} parent=5 // pred_check
        _
      $region34: #{tpu_custom_call.1} parent=5 // pred_check_branch
        %249 = sbr.rel (%p246) target = $region36
      $region35: #{tpu_custom_call.1} parent=5 // pred_region
        %s250 = ssub.s32 %s16, 1
        %s251 = sand.u32 %s59, 1
        %s252 = scalar_lea.sflag [#allocation4], %s251
        %s253 = sand.u32 %s59, 1
        %s254 = smul.addr %s253, 16
        %s255 = scalar_lea.vmem [#allocation3], %s254
        // Predicated region
        $region37: #{tpu_custom_call.1} parent=35 // pred_check
          %p256 = pneg %p72
        $region38: #{tpu_custom_call.1} parent=35 // pred_check_branch
          %258 = sbr.rel (%p256) target = $region40
        $region39: #{tpu_custom_call.1} parent=35 // pred_region
          %260 = dma.done %s252, 256
        $region40: #{tpu_custom_call.1} parent=35 // pred_fallthru
          _
        %s261 = sand.u32 %s59, 1
        %s262 = scalar_lea.sflag [#allocation4], %s261
        %s263 = sand.u32 %s59, 1
        %s264 = smul.addr %s263, 16
        %s265 = scalar_lea.vmem [#allocation3], %s264
        %p266 = pneg %p72
        %p267 = pneg %p69
        %p268 = scmp.lt.s32.totalorder %s28, 0
        %s269 = scalar_select %p268, %s28, 0
        %s270 = smul.addr %s269, 8
        %s271 = scalar_lea.vmem %s1, %s270
        %p272 = pneg %p98
        %p273 = pneg %p95
        %p274 = scmp.lt.s32.totalorder %s28, 0
        %s275 = scalar_select %p274, %s28, 0
        %s276 = smul.addr %s275, 8
        %s277 = scalar_lea.vmem %s2, %s276
        %p278 = pneg %p124
        %p279 = pneg %p121
        %p280 = scmp.lt.s32.totalorder %s28, 0
        %s281 = scalar_select %p280, %s28, 0
        %s282 = smul.addr %s281, 8
        %s283 = scalar_lea.vmem %s3, %s282
        %p284 = pneg %p150
        %p285 = pneg %p147
        %p286 = pneg %p180
        %p287 = pneg %p177
        %s288 = sand.u32 %s167, 1
        %s289 = scalar_lea.sflag [#allocation5], %s288
        %s290 = sand.u32 %s167, 1
        %s291 = smul.addr %s290, 16
        %s292 = scalar_lea.vmem [#allocation6], %s291
        %s293 = smul.u32 2, %s29
        %p294 = scmp.lt.s32.totalorder %s28, 0
        %s295 = scalar_select %p294, %s28, 0
        %s296 = smul.addr %s295, 8
        %s297 = scalar_lea.vmem %s1, %s296
        %p298 = scmp.lt.s32.totalorder %s28, 0
        %s299 = scalar_select %p298, %s28, 0
        %s300 = smul.addr %s299, 8
        %s301 = scalar_lea.vmem %s2, %s300
        %p302 = scmp.lt.s32.totalorder %s28, 0
        %s303 = scalar_select %p302, %s28, 0
        %s304 = smul.addr %s303, 8
        %s305 = scalar_lea.vmem %s3, %s304
        %s306 = smul.u32 2, %s29
        %p307 = scmp.eq.s32.totalorder %s30, 0
        // Predicated region
        $region41: #{tpu_custom_call.1} parent=35 // pred_check
          %p308 = pneg %p307
        $region42: #{tpu_custom_call.1} parent=35 // pred_check_branch
          %310 = sbr.rel (%p308) target = $region44
        $region43: #{tpu_custom_call.1} parent=35 // pred_region
          %311 = vst [vmem:[#allocation2] sm:$0xff] 0.0
          %312 = vst [vmem:[#allocation2 + $0x8] sm:$0xff] 0.0
        $region44: #{tpu_custom_call.1} parent=35 // pred_fallthru
          _
        %v313 = vld [vmem:[%s297] sm:$0xff]
        %v314 = vld [vmem:[#allocation2] sm:$0xff]
        %v315 = vld [vmem:[#allocation2 + $0x8] sm:$0xff]
        %v316 = vld [vmem:[%s255] sm:$0xff]
        %v317 = vld [vmem:[%s255 + $0x8] sm:$0xff]
        %vm318 = vcmask 64512
        %v320 = vsel %vm318, %v313, 0
        %322 = vmatpush.msra.mxu0 0.0
        %323 = vmatpush.msra.mxu0 0.0
        %324 = vmatpush.msra.mxu0 0.0
        %325 = vmatpush.msra.mxu0 0.0
        %326 = vmatpush.msra.mxu0 0.0
        %327 = vmatpush.msra.mxu0 0.0
        %328 = vmatpush.msra.mxu0 0.0
        %329 = vmatpush.msra.mxu0 0.0
        %330 = vmatpush.msra.mxu0 0.0
        %331 = vmatpush.msra.mxu0 0.0
        %332 = vmatpush.msra.mxu0 0.0
        %333 = vmatpush.msra.mxu0 0.0
        %334 = vmatpush.msra.mxu0 0.0
        %335 = vmatpush.msra.mxu0 0.0
        %336 = vmatpush.msra.mxu0 0.0
        %337 = vmatpush.msra.mxu0 %v316
        %338 = vmatmul.f32.gmra.mxu0 %v320
        %v339 = vpop.f32.mrf.mxu0
        %v340 = vadd.f32 0.0, %v339
        %341 = vdwg.mxu0
        %342 = vmatpush.msra.mxu0 0.0
        %343 = vmatpush.msra.mxu0 0.0
        %344 = vmatpush.msra.mxu0 0.0
        %345 = vmatpush.msra.mxu0 0.0
        %346 = vmatpush.msra.mxu0 0.0
        %347 = vmatpush.msra.mxu0 0.0
        %348 = vmatpush.msra.mxu0 0.0
        %349 = vmatpush.msra.mxu0 0.0
        %350 = vmatpush.msra.mxu0 0.0
        %351 = vmatpush.msra.mxu0 0.0
        %352 = vmatpush.msra.mxu0 0.0
        %353 = vmatpush.msra.mxu0 0.0
        %354 = vmatpush.msra.mxu0 0.0
        %355 = vmatpush.msra.mxu0 0.0
        %356 = vmatpush.msra.mxu0 0.0
        %357 = vmatpush.msra.mxu0 %v317
        %358 = vmatmul.f32.gmra.mxu0 %v320
        %v359 = vpop.f32.mrf.mxu0
        %v360 = vadd.f32 0.0, %v359
        %361 = vdwg.mxu0
        %v362 = vadd.f32 %v314, %v340
        %v363 = vadd.f32 %v315, %v360
        %364 = vst [vmem:[#allocation2] sm:$0xff] %v362
        %365 = vst [vmem:[#allocation2 + $0x8] sm:$0xff] %v363
        // Predicated region
        $region45: #{tpu_custom_call.1} parent=35 // pred_check
          %p366 = pneg %p307
        $region46: #{tpu_custom_call.1} parent=35 // pred_check_branch
          %368 = sbr.rel (%p366) target = $region48
        $region47: #{tpu_custom_call.1} parent=35 // pred_region
          %v369 = vld [vmem:[#allocation2] sm:$0xff]
          %v370 = vld [vmem:[#allocation2 + $0x8] sm:$0xff]
          %v371 = vld [vmem:[%s301] sm:$0xff]
          %373 = vset.pattern.permute.xlu0 0
          %374 = vperm.xlu0 %373, %v371
          %v375 = vpop.permute.xlu0 %374
          %v377 = vmul.f32 %v369, %v375
          %v378 = vmul.f32 %v370, %v375
          %v379 = vld [vmem:[%s305] sm:$0xff]
          %381 = vset.pattern.permute.xlu0 0
          %382 = vperm.xlu0 %381, %v379
          %v383 = vpop.permute.xlu0 %382
          %v385 = vadd.f32 %v377, %v383
          %v386 = vadd.f32 %v378, %v383
          %vm387 = vcmp.ge.f32.partialorder %v385, 0.0
          %vm388 = vcmp.ge.f32.partialorder %v386, 0.0
          %v389 = vmul.f32 %v385, 0.01
          %v390 = vmul.f32 %v386, 0.01
          %v391 = vsel %vm387, %v385, %v389
          %v392 = vsel %vm388, %v386, %v390
          %393 = vst [vmem:[%s292] sm:$0xff] %v391
          %394 = vst [vmem:[%s292 + $0x8] sm:$0xff] %v392
        $region48: #{tpu_custom_call.1} parent=35 // pred_fallthru
          _
        %s395 = sand.u32 %s167, 1
        %s396 = scalar_lea.sflag [#allocation5], %s395
        %s397 = sand.u32 %s167, 1
        %s398 = smul.addr %s397, 16
        %s399 = scalar_lea.vmem [#allocation6], %s398
        // Predicated region
        $region49: #{tpu_custom_call.1} parent=35 // pred_check
          %p400 = pneg %p177
        $region50: #{tpu_custom_call.1} parent=35 // pred_check_branch
          %402 = sbr.rel (%p400) target = $region52
        $region51: #{tpu_custom_call.1} parent=35 // pred_region
          %s403 = smul.u32 2, %s29
          %405 = vsyncadd %s396, 0
          %s406 = smul.addr %s28, 2
          %s407 = sadd.s32 %s403, %s406
          %s408 = smul.addr %s27, 2
          %s409 = sadd.s32 %s407, %s408
          %s410 = smul.addr %s409, 8
          %s411 = scalar_lea.hbm %s4, %s410
          %s413 = sshll.u32 %s399, 4
          %s414 = int_to_ptr.vmem [resolvable:$true] %s413
          %s415 = sshll.u32 %s411, 4
          %s416 = int_to_ptr.hbm [resolvable:$true] %s415
          %418 = dma.vmem_to_hbm [thread:$0]  %s414, 256, %s416, %s396
        $region52: #{tpu_custom_call.1} parent=35 // pred_fallthru
          _
      $region36: #{tpu_custom_call.1} parent=5 // pred_fallthru
        _
      %p419 = scmp.le.s32.totalorder 2, %s16
      // Predicated region
      $region53: #{tpu_custom_call.1} parent=5 // pred_check
        %p420 = pneg %p419
      $region54: #{tpu_custom_call.1} parent=5 // pred_check_branch
        %422 = sbr.rel (%p420) target = $region56
      $region55: #{tpu_custom_call.1} parent=5 // pred_region
        %s423 = ssub.s32 %s16, 2
        // Predicated region
        $region57: #{tpu_custom_call.1} parent=55 // pred_check
          %p424 = pneg %p183
        $region58: #{tpu_custom_call.1} parent=55 // pred_check_branch
          %426 = sbr.rel (%p424) target = $region60
        $region59: #{tpu_custom_call.1} parent=55 // pred_region
          %s427 = sand.u32 %s168, 1
          %s428 = scalar_lea.sflag [#allocation5], %s427
          %s429 = sand.u32 %s168, 1
          %s430 = smul.addr %s429, 16
          %s431 = scalar_lea.vmem [#allocation6], %s430
          %433 = dma.done %s428, 256
        $region60: #{tpu_custom_call.1} parent=55 // pred_fallthru
          _
      $region56: #{tpu_custom_call.1} parent=5 // pred_fallthru
        _
    $region6: #{tpu_custom_call.1} parent=1 // loop_footer
      %s20 = sadd.s32 1, %s16
    $region7: #{tpu_custom_call.1} parent=1 // loop_footer_branch
      %15 = sbr.rel target = $region3
    $region8: #{tpu_custom_call.1} parent=1 // loop_exit
      _
    %434 = vsyncpa [#allocation4], 1
    %s435 = scalar_lea.sflag [#allocation4], 1
    %436 = vsyncpa %s435, 1
    %437 = vsyncpa [#allocation5], 1
    %s438 = scalar_lea.sflag [#allocation5], 1
    %439 = vsyncpa %s438, 1

</llo_original>
